<compile_context>
chip_gen: v6e
topology: v6e:2x2x1
jax: 0.10.0
libtpu: 0.0.40
codegen_flags: <defaults>
</compile_context>

<pallas_src>
import jax
import jax.numpy as jnp
from jax.experimental import pallas as pl
from jax.experimental.pallas import tpu as pltpu


# ----------------------------------------------------------------------------
# Coefficient primitives (mirrors the PyTorch get_coeffs_primitives exactly,
# including the coef1/coef2 ordering of the source module).
# ----------------------------------------------------------------------------
def get_coeffs_primitives(T: int = 1000, beta_min: float = 1e-4,
                          beta_max: float = 0.02):
    betas = jnp.linspace(beta_min, beta_max, T, dtype=jnp.float32)
    alphas = 1.0 - betas
    sqrt_alphas = jnp.sqrt(alphas)
    alphas_hat = jnp.cumprod(alphas, axis=0)
    alphas_hat_prev = jnp.concatenate(
        [jnp.ones((1,), jnp.float32), alphas_hat[:-1]])
    sqrt_alphas_hat = jnp.sqrt(alphas_hat)
    sqrt_1m_alphas_hat = jnp.sqrt(1.0 - alphas_hat)
    posterior_mean_coef1 = (1 - alphas_hat_prev) / (1 - alphas_hat) * sqrt_alphas
    posterior_mean_coef2 = jnp.sqrt(alphas_hat_prev) / (1 - alphas_hat) * betas
    posterior_variance = (1 - alphas_hat_prev) / (1 - alphas_hat) * betas
    return {
        'betas': betas,
        'alphas': alphas,
        'sqrt_alphas_hat': sqrt_alphas_hat,
        'sqrt_1m_alphas_hat': sqrt_1m_alphas_hat,
        'posterior_mean_coef1': posterior_mean_coef1,
        'posterior_mean_coef2': posterior_mean_coef2,
        'posterior_variance': posterior_variance,
    }


# ----------------------------------------------------------------------------
# Pallas kernel: row-broadcast fused a*x0 + b*eps over a (TB, TN) tile
# ----------------------------------------------------------------------------
def _ddpm_forward_kernel(a_ref, v_ref, x0_ref, eps_ref, xt_ref):
    # a_ref / v_ref : (TB, 1)  f32 per-row coefficients (sublane broadcast)
    # x0_ref / eps_ref / xt_ref : (TB, TN) lane-dense tiles
    xt = a_ref[...] * x0_ref[...] + v_ref[...] * eps_ref[...]
    xt_ref[...] = xt.astype(xt_ref.dtype)


# ----------------------------------------------------------------------------
# Generation-aware VMEM budgets
# ----------------------------------------------------------------------------
def _vmem_budget():
    """Return (max_tile_bytes, vmem_limit_bytes) tuned per TPU generation."""
    phys = 128 * 1024 * 1024
    try:
        info = pltpu.get_tpu_info()
        phys = int(getattr(info, "vmem_capacity_bytes", phys))
    except Exception:
        pass
    if phys <= 64 * 1024 * 1024:
        # v7x: only 64 MiB physical VMEM per TensorCore.
        # 3 streams x 2 buffers x 4 MiB = 24 MiB; keep scoped limit <= ~28 MiB.
        return 4 * 1024 * 1024, 28 * 1024 * 1024
    # v5e / v6e: 128 MiB physical. Raise the scoped limit explicitly (defaults
    # are 16 / 32 MiB) so 4 MiB/buffer tiles fit with comfortable headroom.
    return 4 * 1024 * 1024, 48 * 1024 * 1024


# ----------------------------------------------------------------------------
# Tile selection
# ----------------------------------------------------------------------------
def _pick_tiles(B: int, N: int, dtype_bytes: int, max_tile_bytes: int):
    """Pick (TB, TN) respecting the (8,128) rule and a per-buffer byte cap.

    TB starts at 8 (sublane aligned) when B is a multiple of 8, else B.
    TN is the largest multiple of 128 dividing N within the cap; falls back to
    the full extent N (always legal).  When TN already spans the whole row and
    B is 8-aligned, TB grows in multiples of 8 (dividing B) up to the cap so
    the ~0.35 us/step grid overhead is amortized for small C*H*W.
    Tiles always divide the array exactly, so there are no partial blocks.
    """
    tb = 8 if (B % 8 == 0 and B >= 8) else B

    cap_n = max(128, max_tile_bytes // (dtype_bytes * tb))
    tn = None
    c = 128
    limit = min(N, cap_n)
    while c <= limit:
        if N % c == 0:
            tn = c
        c += 128
    if tn is None:
        tn = N  # full extent is always a legal block dim

    # Grow TB once the lane axis is already fully covered by one tile.
    if tn == N and B % 8 == 0 and B > tb:
        best = tb
        t = tb
        while t <= B:
            if (B % t == 0) and (t % 8 == 0) and \
                    (t * tn * dtype_bytes <= max_tile_bytes):
                best = t
            t += 8
        tb = best
    return tb, tn


def _ensure_multi_block(B: int, N: int, tb: int, tn: int):
    """If the grid collapsed to a single block, split a parallel axis so both
    v7x TensorCores get work.  At most one extra grid step on v5e/v6e."""
    if (B // tb) * (N // tn) >= 2:
        return tb, tn
    # Prefer splitting the lane axis (keeps lane-dense stores).
    best = None
    c = 128
    while c <= N // 2:
        if N % c == 0:
            best = c
        c += 128
    if best is not None:
        return tb, best
    # Otherwise split the batch axis if it stays (8,·)-legal.
    if tb % 8 == 0 and tb >= 16:
        best_b = None
        t = 8
        while t <= tb // 2:
            if B % t == 0:
                best_b = t
            t += 8
        if best_b is not None:
            return best_b, tn
    return tb, tn


# ----------------------------------------------------------------------------
# Module
# ----------------------------------------------------------------------------
class DDPMDynamic:
    """JAX / Pallas port of the PyTorch DDPMDynamic noise scheduler."""

    def __init__(self, model_config):
        beta_min = model_config['beta_min']
        beta_max = model_config['beta_max']
        self.T = model_config['num_timesteps']
        coeffs = get_coeffs_primitives(self.T, beta_min, beta_max)
        for name, arr in coeffs.items():
            setattr(self, name, arr)

    def sample_time_on_device(self, key, batch_size: int = 1):
        return jax.random.randint(key, (batch_size,), 0, self.T, dtype=jnp.int32)

    def forward(self, batch, donate_x0: bool = False):
        x_0 = batch['x_0']              # [B, C, H, W] float (NCHW, row-major)
        t = batch['t']                  # [B] int
        eps = batch['eps']              # [B, C, H, W] float

        B, C, H, W = x_0.shape
        N = C * H * W
        dtype_bytes = x_0.dtype.itemsize

        # Lane-dense flatten: trailing axis is C*H*W instead of W. (Free for
        # standard row-major NCHW inputs; strided inputs would force a copy.)
        x0_r = x_0.reshape(B, N)
        eps_r = eps.reshape(B, N)

        # Pad the flattened axis to a 128 multiple so stores stay unmasked.
        Np = ((N + 127) // 128) * 128
        padded = Np != N
        if padded:
            x0_r = jnp.pad(x0_r, ((0, 0), (0, Np - N)))
            eps_r = jnp.pad(eps_r, ((0, 0), (0, Np - N)))

        # extract_values_from_times: B scalar gathers, done in the wrapper and
        # shipped as (B, 1) f32 row coefficients.
        t = t.astype(jnp.int32)
        a = self.sqrt_alphas_hat[t].reshape(B, 1)
        v = self.sqrt_1m_alphas_hat[t].reshape(B, 1)

        max_tile_bytes, vmem_limit = _vmem_budget()
        tb, tn = _pick_tiles(B, Np, dtype_bytes, max_tile_bytes)
        tb, tn = _ensure_multi_block(B, Np, tb, tn)
        grid = (B // tb, Np // tn)

        cost = pl.CostEstimate(
            flops=3 * B * Np,
            transcendentals=0,
            bytes_accessed=(3 * B * Np + 2 * B) * dtype_bytes,
        )

        kwargs = {}
        if donate_x0 and not padded:
            # x0_r (input index 2) aliases the x_t output buffer.
            kwargs['input_output_aliases'] = {2: 0}

        x_t = pl.pallas_call(
            _ddpm_forward_kernel,
            grid=grid,
            in_specs=[
                pl.BlockSpec((tb, 1), lambda i, j: (i, 0)),   # a (per-row coef)
                pl.BlockSpec((tb, 1), lambda i, j: (i, 0)),   # v (per-row coef)
                pl.BlockSpec((tb, tn), lambda i, j: (i, j)),  # x_0
                pl.BlockSpec((tb, tn), lambda i, j: (i, j)),  # eps
            ],
            out_specs=pl.BlockSpec((tb, tn), lambda i, j: (i, j)),
            out_shape=jax.ShapeDtypeStruct((B, Np), x_0.dtype),
            compiler_params=pltpu.CompilerParams(
                dimension_semantics=("parallel", "parallel"),
                vmem_limit_bytes=vmem_limit),
            cost_estimate=cost,
            **kwargs,
        )(a, v, x0_r, eps_r)

        if padded:
            x_t = x_t[:, :N]

        # TODO(synk): optionally fuse eps generation in-kernel
        # (pltpu.prng_seed + pltpu.stateful_normal, eps as a second output) to
        # cut one full HBM stream when the caller does not supply eps.
        return {'x_t': x_t.reshape(B, C, H, W), 'eps': eps}

    __call__ = forward


# ----------------------------------------------------------------------------
# Demo / self-test
# ----------------------------------------------------------------------------
if __name__ == "__main__":
    key = jax.random.PRNGKey(0)
    k1, k2, k3 = jax.random.split(key, 3)

    B, C, H, W = 2, 4, 16, 16
    model_config = {'beta_min': 1e-4, 'beta_max': 0.02, 'num_timesteps': 1000}

    sched = DDPMDynamic(model_config)

    x_0 = jax.random.normal(k1, (B, C, H, W), dtype=jnp.float32)
    eps = jax.random.normal(k2, (B, C, H, W), dtype=jnp.float32)
    t = jax.random.randint(k3, (B,), 0, model_config['num_timesteps'],
                           dtype=jnp.int32)

    out = sched({'x_0': x_0, 't': t, 'eps': eps})
    x_t = jax.block_until_ready(out['x_t'])

    # Pure-JAX reference check (extract_values_from_times + FMA).
    a_ref = sched.sqrt_alphas_hat[t][:, None, None, None]
    v_ref = sched.sqrt_1m_alphas_hat[t][:, None, None, None]
    ref = a_ref * x_0 + v_ref * eps
    assert x_t.shape == (B, C, H, W)
    assert jnp.allclose(x_t, ref, atol=1e-6, rtol=1e-6)
    assert jnp.array_equal(out['eps'], eps)

    print("KERNEL_OK")
</pallas_src>

<mosaic_0001>
module attributes {stable_mosaic.version = 11 : i64} {
  func.func @_ddpm_forward_kernel(%arg0: i32, %arg1: i32, %arg2: memref<2x1xf32, #tpu.memory_space<vmem>>, %arg3: memref<2x1xf32, #tpu.memory_space<vmem>>, %arg4: memref<2x512xf32, #tpu.memory_space<vmem>>, %arg5: memref<2x512xf32, #tpu.memory_space<vmem>>, %arg6: memref<2x512xf32, #tpu.memory_space<vmem>>) attributes {dimension_semantics = [#tpu.dimension_semantics<parallel>, #tpu.dimension_semantics<parallel>], iteration_bounds = array<i64: 1, 2>, scalar_prefetch = 0 : i64, scratch_operands = 0 : i64, tpu.core_type = #tpu.core_type<tc>, window_params = [{transform_indices = @transform_0, window_bounds = array<i64: 2, 1>}, {transform_indices = @transform_1, window_bounds = array<i64: 2, 1>}, {transform_indices = @transform_2, window_bounds = array<i64: 2, 512>}, {transform_indices = @transform_3, window_bounds = array<i64: 2, 512>}, {transform_indices = @transform_4, window_bounds = array<i64: 2, 512>}]} {
    %c0 = arith.constant 0 : index
    %c0_0 = arith.constant 0 : index
    %0 = vector.load %arg2[%c0, %c0_0] : memref<2x1xf32, #tpu.memory_space<vmem>>, vector<2x1xf32>
    %c0_1 = arith.constant 0 : index
    %c0_2 = arith.constant 0 : index
    %1 = vector.load %arg4[%c0_1, %c0_2] : memref<2x512xf32, #tpu.memory_space<vmem>>, vector<2x512xf32>
    %2 = vector.broadcast %0 : vector<2x1xf32> to vector<2x512xf32>
    %3 = arith.mulf %2, %1 : vector<2x512xf32>
    %c0_3 = arith.constant 0 : index
    %c0_4 = arith.constant 0 : index
    %4 = vector.load %arg3[%c0_3, %c0_4] : memref<2x1xf32, #tpu.memory_space<vmem>>, vector<2x1xf32>
    %c0_5 = arith.constant 0 : index
    %c0_6 = arith.constant 0 : index
    %5 = vector.load %arg5[%c0_5, %c0_6] : memref<2x512xf32, #tpu.memory_space<vmem>>, vector<2x512xf32>
    %6 = vector.broadcast %4 : vector<2x1xf32> to vector<2x512xf32>
    %7 = arith.mulf %6, %5 : vector<2x512xf32>
    %8 = arith.addf %3, %7 : vector<2x512xf32>
    %c0_7 = arith.constant 0 : index
    %c0_8 = arith.constant 0 : index
    %9 = vector.load %arg6[%c0_7, %c0_8] : memref<2x512xf32, #tpu.memory_space<vmem>>, vector<2x512xf32>
    tpu.vector_store %arg6[%c0_7, %c0_8], %8 {strides = array<i32>} : memref<2x512xf32, #tpu.memory_space<vmem>>, vector<2x512xf32>,
    return
  }
  func.func @transform_0(%arg0: i32, %arg1: i32) -> (i32, i32) {
    %c0_i32 = arith.constant 0 : i32
    %c0_i32_0 = arith.constant 0 : i32
    return %arg0, %c0_i32 : i32, i32
  }
  func.func @transform_1(%arg0: i32, %arg1: i32) -> (i32, i32) {
    %c0_i32 = arith.constant 0 : i32
    %c0_i32_0 = arith.constant 0 : i32
    return %arg0, %c0_i32 : i32, i32
  }
  func.func @transform_2(%arg0: i32, %arg1: i32) -> (i32, i32) {
    %c0_i32 = arith.constant 0 : i32
    return %arg0, %arg1 : i32, i32
  }
  func.func @transform_3(%arg0: i32, %arg1: i32) -> (i32, i32) {
    %c0_i32 = arith.constant 0 : i32
    return %arg0, %arg1 : i32, i32
  }
  func.func @transform_4(%arg0: i32, %arg1: i32) -> (i32, i32) {
    %c0_i32 = arith.constant 0 : i32
    return %arg0, %arg1 : i32, i32
  }
}

</mosaic_0001>

<llo_original>
// kernel: tpu_custom_call.1
$region0: #{tpu_custom_call.1}
  #allocation0 [shape = 'u32[]', space=smem, size = 0x4, offset = 0x4, fixed_abs, tag = 'smem constant byte address 0x4 - core index']
  #allocation1 [shape = 'u32[144,128]{1,0:T(1,128)}', space=vmem, size = 0x12000, scoped, tag = 'internal scratch']
  %s0 = inlined_call_operand.vmem [shape: f32[2,1], index: 0, kind: input, shape index: {}]
  %s1 = inlined_call_operand.vmem [shape: f32[2,1], index: 1, kind: input, shape index: {}]
  %s2 = inlined_call_operand.hbm [shape: f32[2,1024], index: 2, kind: input, shape index: {}]
  %s3 = inlined_call_operand.hbm [shape: f32[2,1024], index: 3, kind: input, shape index: {}]
  %s4 = inlined_call_operand.hbm [shape: f32[2,1024], index: 4, kind: output, shape index: {}]
  %s5 = sld [smem:[#allocation0]]
  $region57: #{tpu_custom_call.1} parent=0
    _
  %s7 = ssub.s32 1, %s5
  %s8 = scalar_select 0, %s7, %s5
  $region1: #{tpu_custom_call.1} parent=0
    #allocation2 [shape = 'u8[8192]{0}', space=vmem, size = 0x2000, scoped, tag = 'input window, operand 2']
    #allocation3 [shape = 's32[2]{0}', space=sflag, size = 0x8, scoped, tag = 'scoped memory for tpu_custom_call.1']
    #allocation4 [shape = 's32[2]{0}', space=sflag, size = 0x8, scoped, tag = 'scoped memory for tpu_custom_call.1']
    #allocation5 [shape = 'u8[8192]{0}', space=vmem, size = 0x2000, scoped, tag = 'input window, operand 3']
    #allocation6 [shape = 's32[2]{0}', space=sflag, size = 0x8, scoped, tag = 'scoped memory for tpu_custom_call.1']
    #allocation7 [shape = 'u8[8192]{0}', space=vmem, size = 0x2000, scoped, tag = 'output window, operand 0']
    %9 = vsyncpa [#allocation3], 0
    %s10 = scalar_lea.sflag [#allocation3], 1
    %11 = vsyncpa %s10, 0
    %12 = vsyncpa [#allocation6], 0
    %s13 = scalar_lea.sflag [#allocation6], 1
    %14 = vsyncpa %s13, 0
    %15 = vsyncpa [#allocation4], 0
    %s16 = scalar_lea.sflag [#allocation4], 1
    %17 = vsyncpa %s16, 0
    loop: start=0, step=1, limit=4
    $region2: #{tpu_custom_call.1} parent=1 // loop_pre_header
      _
    $region3: #{tpu_custom_call.1} parent=1 // loop_header
      %s19 = sphi 0, %s23
      %p20 = scmp.ge.s32.totalorder %s19, 4
      %s26 = sphi 0, %s38
      %s27 = sphi 0, %s34
      %s28 = sphi 0, %s26
      %s29 = sphi 0, %s27
      %s30 = sphi 0, %s28
      %s31 = sphi 0, %s29
      %s41 = sphi 0, %s43
      %s44 = sphi 0, %s41
      %s45 = sphi 0, %s44
      %s61 = sphi 0, %s45
      %s67 = sphi 0, %s69
      %s70 = sphi 0, %s67
      %s71 = sphi 0, %s70
      %s87 = sphi 0, %s71
      %s95 = sphi 0, %s97
      %s98 = sphi 0, %s95
      %s99 = sphi 0, %s98
      %s115 = sphi 0, %s99
      %s123 = sphi 0, %s125
      %s126 = sphi 0, %s123
      %s127 = sphi 0, %s126
      %s143 = sphi 0, %s127
      %s151 = sphi 0, %s153
      %s154 = sphi 0, %s151
      %s155 = sphi 0, %s154
      %s171 = sphi 0, %s155
    $region4: #{tpu_custom_call.1} parent=1 // loop_header_branch
      %22 = sbr.rel (%p20) target = $region8
    $region5: #{tpu_custom_call.1} parent=1 // loop_body
      %s24 = ssub.s32 %s19, 1
      %s25 = ssub.s32 %s19, 2
      %s32 = sadd.s32 1, %s27
      %p33 = scmp.ge.s32.totalorder %s32, 2
      %s34 = scalar_select %p33, 0, %s32
      %s35 = sadd.s32 1, %s26
      %s36 = scalar_select %p33, %s35, %s26
      %p37 = scmp.ge.s32.totalorder %s36, 1
      %s38 = scalar_select %p37, 0, %s36
      %s39 = ssub.s32 %s26, %s38
      %p40 = scmp.eq.s32.totalorder %s39, 0
      %s42 = sadd.s32 %s41, 1
      %s43 = scalar_select %p40, %s41, %s42
      %p46 = pneg %p40
      %p47 = scmp.eq.s32.totalorder %s19, 1
      %p48 = por %p46, %p47
      %p49 = scmp.ne.s32.totalorder %s41, %s44
      %p50 = scmp.eq.s32.totalorder %s19, 0
      %p51 = por %p49, %p50
      %p52 = scmp.ne.s32.totalorder %s41, %s44
      %p53 = scmp.eq.s32.totalorder %s24, 1
      %p54 = por %p52, %p53
      %p55 = scmp.ne.s32.totalorder %s44, %s45
      %p56 = scmp.eq.s32.totalorder %s24, 0
      %p57 = por %p55, %p56
      %p58 = scmp.ne.s32.totalorder %s44, %s45
      %p59 = scmp.eq.s32.totalorder %s25, 1
      %p60 = por %p58, %p59
      %p62 = scmp.ne.s32.totalorder %s45, %s61
      %p63 = scmp.eq.s32.totalorder %s25, 0
      %p64 = por %p62, %p63
      %s65 = ssub.s32 %s26, %s38
      %p66 = scmp.eq.s32.totalorder %s65, 0
      %s68 = sadd.s32 %s67, 1
      %s69 = scalar_select %p66, %s67, %s68
      %p72 = pneg %p66
      %p73 = scmp.eq.s32.totalorder %s19, 1
      %p74 = por %p72, %p73
      %p75 = scmp.ne.s32.totalorder %s67, %s70
      %p76 = scmp.eq.s32.totalorder %s19, 0
      %p77 = por %p75, %p76
      %p78 = scmp.ne.s32.totalorder %s67, %s70
      %p79 = scmp.eq.s32.totalorder %s24, 1
      %p80 = por %p78, %p79
      %p81 = scmp.ne.s32.totalorder %s70, %s71
      %p82 = scmp.eq.s32.totalorder %s24, 0
      %p83 = por %p81, %p82
      %p84 = scmp.ne.s32.totalorder %s70, %s71
      %p85 = scmp.eq.s32.totalorder %s25, 1
      %p86 = por %p84, %p85
      %p88 = scmp.ne.s32.totalorder %s71, %s87
      %p89 = scmp.eq.s32.totalorder %s25, 0
      %p90 = por %p88, %p89
      %s91 = ssub.s32 %s26, %s38
      %s92 = ssub.s32 %s27, %s34
      %s93 = sor.u32 %s91, %s92
      %p94 = scmp.eq.s32.totalorder %s93, 0
      %s96 = sadd.s32 %s95, 1
      %s97 = scalar_select %p94, %s95, %s96
      %p100 = pneg %p94
      %p101 = scmp.eq.s32.totalorder %s19, 1
      %p102 = por %p100, %p101
      %p103 = scmp.ne.s32.totalorder %s95, %s98
      %p104 = scmp.eq.s32.totalorder %s19, 0
      %p105 = por %p103, %p104
      %p106 = scmp.ne.s32.totalorder %s95, %s98
      %p107 = scmp.eq.s32.totalorder %s24, 1
      %p108 = por %p106, %p107
      %p109 = scmp.ne.s32.totalorder %s98, %s99
      %p110 = scmp.eq.s32.totalorder %s24, 0
      %p111 = por %p109, %p110
      %p112 = scmp.ne.s32.totalorder %s98, %s99
      %p113 = scmp.eq.s32.totalorder %s25, 1
      %p114 = por %p112, %p113
      %p116 = scmp.ne.s32.totalorder %s99, %s115
      %p117 = scmp.eq.s32.totalorder %s25, 0
      %p118 = por %p116, %p117
      %s119 = ssub.s32 %s26, %s38
      %s120 = ssub.s32 %s27, %s34
      %s121 = sor.u32 %s119, %s120
      %p122 = scmp.eq.s32.totalorder %s121, 0
      %s124 = sadd.s32 %s123, 1
      %s125 = scalar_select %p122, %s123, %s124
      %p128 = pneg %p122
      %p129 = scmp.eq.s32.totalorder %s19, 1
      %p130 = por %p128, %p129
      %p131 = scmp.ne.s32.totalorder %s123, %s126
      %p132 = scmp.eq.s32.totalorder %s19, 0
      %p133 = por %p131, %p132
      %p134 = scmp.ne.s32.totalorder %s123, %s126
      %p135 = scmp.eq.s32.totalorder %s24, 1
      %p136 = por %p134, %p135
      %p137 = scmp.ne.s32.totalorder %s126, %s127
      %p138 = scmp.eq.s32.totalorder %s24, 0
      %p139 = por %p137, %p138
      %p140 = scmp.ne.s32.totalorder %s126, %s127
      %p141 = scmp.eq.s32.totalorder %s25, 1
      %p142 = por %p140, %p141
      %p144 = scmp.ne.s32.totalorder %s127, %s143
      %p145 = scmp.eq.s32.totalorder %s25, 0
      %p146 = por %p144, %p145
      %s147 = ssub.s32 %s26, %s38
      %s148 = ssub.s32 %s27, %s34
      %s149 = sor.u32 %s147, %s148
      %p150 = scmp.eq.s32.totalorder %s149, 0
      %s152 = sadd.s32 %s151, 1
      %s153 = scalar_select %p150, %s151, %s152
      %p156 = pneg %p150
      %p157 = scmp.eq.s32.totalorder %s19, 1
      %p158 = por %p156, %p157
      %p159 = scmp.ne.s32.totalorder %s151, %s154
      %p160 = scmp.eq.s32.totalorder %s19, 0
      %p161 = por %p159, %p160
      %p162 = scmp.ne.s32.totalorder %s151, %s154
      %p163 = scmp.eq.s32.totalorder %s24, 1
      %p164 = por %p162, %p163
      %p165 = scmp.ne.s32.totalorder %s154, %s155
      %p166 = scmp.eq.s32.totalorder %s24, 0
      %p167 = por %p165, %p166
      %p168 = scmp.ne.s32.totalorder %s154, %s155
      %p169 = scmp.eq.s32.totalorder %s25, 1
      %p170 = por %p168, %p169
      %p172 = scmp.ne.s32.totalorder %s155, %s171
      %p173 = scmp.eq.s32.totalorder %s25, 0
      %p174 = por %p172, %p173
      %p175 = scmp.le.s32.totalorder 1, %s19
      %p176 = scmp.lt.s32.totalorder %s19, 3
      %p177 = pnand %p175, %p176
      %p178 = pneg %p177
      // Predicated region
      $region9: #{tpu_custom_call.1} parent=5 // pred_check
        _
      $region10: #{tpu_custom_call.1} parent=5 // pred_check_branch
        %180 = sbr.rel (%p177) target = $region12
      $region11: #{tpu_custom_call.1} parent=5 // pred_region
        %s181 = ssub.s32 %s19, 1
        // Predicated region
        $region13: #{tpu_custom_call.1} parent=11 // pred_check
          %p182 = pneg %p57
        $region14: #{tpu_custom_call.1} parent=11 // pred_check_branch
          %184 = sbr.rel (%p182) target = $region16
        $region15: #{tpu_custom_call.1} parent=11 // pred_region
          %p185 = scmp.lt.s32.totalorder %s28, 0
          %s186 = scalar_select %p185, %s28, 0
          %s187 = smul.addr %s186, 2
          %s188 = scalar_lea.vmem %s0, %s187
        $region16: #{tpu_custom_call.1} parent=11 // pred_fallthru
          _
        // Predicated region
        $region17: #{tpu_custom_call.1} parent=11 // pred_check
          %p189 = pneg %p83
        $region18: #{tpu_custom_call.1} parent=11 // pred_check_branch
          %191 = sbr.rel (%p189) target = $region20
        $region19: #{tpu_custom_call.1} parent=11 // pred_region
          %p192 = scmp.lt.s32.totalorder %s28, 0
          %s193 = scalar_select %p192, %s28, 0
          %s194 = smul.addr %s193, 2
          %s195 = scalar_lea.vmem %s1, %s194
        $region20: #{tpu_custom_call.1} parent=11 // pred_fallthru
          _
      $region12: #{tpu_custom_call.1} parent=5 // pred_fallthru
        _
      %p196 = scmp.lt.s32.totalorder %s19, 2
      // Predicated region
      $region21: #{tpu_custom_call.1} parent=5 // pred_check
        %p197 = pneg %p196
      $region22: #{tpu_custom_call.1} parent=5 // pred_check_branch
        %199 = sbr.rel (%p197) target = $region24
      $region23: #{tpu_custom_call.1} parent=5 // pred_region
        // Predicated region
        $region25: #{tpu_custom_call.1} parent=23 // pred_check
          %p200 = pneg %p105
        $region26: #{tpu_custom_call.1} parent=23 // pred_check_branch
          %202 = sbr.rel (%p200) target = $region28
        $region27: #{tpu_custom_call.1} parent=23 // pred_region
          %s203 = sand.u32 %s95, 1
          %s204 = scalar_lea.sflag [#allocation3], %s203
          %s205 = sand.u32 %s95, 1
          %s206 = smul.addr %s205, 8
          %s207 = scalar_lea.vmem [#allocation2], %s206
          %s208 = smul.u32 4, %s27
          %s210 = ssub.s32 128, 128
          %211 = vsyncadd %s204, %s210
          %s212 = smul.addr %s26, 8
          %s213 = sadd.s32 %s208, %s212
          %s214 = smul.addr %s213, 32
          %s215 = scalar_lea.hbm %s2, %s214
          %s217 = sshll.u32 %s207, 4
          %s218 = int_to_ptr.vmem [resolvable:$true] %s217
          %220 = dma.hbm_to_vmem [thread:$0]  %s215, 128, %s218, %s204
        $region28: #{tpu_custom_call.1} parent=23 // pred_fallthru
          _
        // Predicated region
        $region29: #{tpu_custom_call.1} parent=23 // pred_check
          %p221 = pneg %p133
        $region30: #{tpu_custom_call.1} parent=23 // pred_check_branch
          %223 = sbr.rel (%p221) target = $region32
        $region31: #{tpu_custom_call.1} parent=23 // pred_region
          %s224 = sand.u32 %s123, 1
          %s225 = scalar_lea.sflag [#allocation6], %s224
          %s226 = sand.u32 %s123, 1
          %s227 = smul.addr %s226, 8
          %s228 = scalar_lea.vmem [#allocation5], %s227
          %s229 = smul.u32 4, %s27
          %s231 = ssub.s32 128, 128
          %232 = vsyncadd %s225, %s231
          %s233 = smul.addr %s26, 8
          %s234 = sadd.s32 %s229, %s233
          %s235 = smul.addr %s234, 32
          %s236 = scalar_lea.hbm %s3, %s235
          %s238 = sshll.u32 %s228, 4
          %s239 = int_to_ptr.vmem [resolvable:$true] %s238
          %241 = dma.hbm_to_vmem [thread:$0]  %s236, 128, %s239, %s225
        $region32: #{tpu_custom_call.1} parent=23 // pred_fallthru
          _
      $region24: #{tpu_custom_call.1} parent=5 // pred_fallthru
        _
      %p242 = scmp.le.s32.totalorder 1, %s19
      %p243 = scmp.lt.s32.totalorder %s19, 3
      %p244 = pnand %p242, %p243
      %p245 = pneg %p244
      // Predicated region
      $region33: #{tpu_custom_call.1} parent=5 // pred_check
        _
      $region34: #{tpu_custom_call.1} parent=5 // pred_check_branch
        %247 = sbr.rel (%p244) target = $region36
      $region35: #{tpu_custom_call.1} parent=5 // pred_region
        %s248 = ssub.s32 %s19, 1
        %s249 = sand.u32 %s98, 1
        %s250 = scalar_lea.sflag [#allocation3], %s249
        %s251 = sand.u32 %s98, 1
        %s252 = smul.addr %s251, 8
        %s253 = scalar_lea.vmem [#allocation2], %s252
        // Predicated region
        $region37: #{tpu_custom_call.1} parent=35 // pred_check
          %p254 = pneg %p111
        $region38: #{tpu_custom_call.1} parent=35 // pred_check_branch
          %256 = sbr.rel (%p254) target = $region40
        $region39: #{tpu_custom_call.1} parent=35 // pred_region
          %257 = dma.done %s250, 128
        $region40: #{tpu_custom_call.1} parent=35 // pred_fallthru
          _
        %s258 = sand.u32 %s126, 1
        %s259 = scalar_lea.sflag [#allocation6], %s258
        %s260 = sand.u32 %s126, 1
        %s261 = smul.addr %s260, 8
        %s262 = scalar_lea.vmem [#allocation5], %s261
        // Predicated region
        $region41: #{tpu_custom_call.1} parent=35 // pred_check
          %p263 = pneg %p139
        $region42: #{tpu_custom_call.1} parent=35 // pred_check_branch
          %265 = sbr.rel (%p263) target = $region44
        $region43: #{tpu_custom_call.1} parent=35 // pred_region
          %266 = dma.done %s259, 128
        $region44: #{tpu_custom_call.1} parent=35 // pred_fallthru
          _
        %p267 = scmp.lt.s32.totalorder %s28, 0
        %s268 = scalar_select %p267, %s28, 0
        %s269 = smul.addr %s268, 2
        %s270 = scalar_lea.vmem %s0, %s269
        %p271 = pneg %p57
        %p272 = pneg %p54
        %p273 = scmp.lt.s32.totalorder %s28, 0
        %s274 = scalar_select %p273, %s28, 0
        %s275 = smul.addr %s274, 2
        %s276 = scalar_lea.vmem %s1, %s275
        %p277 = pneg %p83
        %p278 = pneg %p80
        %s279 = sand.u32 %s98, 1
        %s280 = scalar_lea.sflag [#allocation3], %s279
        %s281 = sand.u32 %s98, 1
        %s282 = smul.addr %s281, 8
        %s283 = scalar_lea.vmem [#allocation2], %s282
        %p284 = pneg %p111
        %p285 = pneg %p108
        %s286 = sand.u32 %s126, 1
        %s287 = scalar_lea.sflag [#allocation6], %s286
        %s288 = sand.u32 %s126, 1
        %s289 = smul.addr %s288, 8
        %s290 = scalar_lea.vmem [#allocation5], %s289
        %p291 = pneg %p139
        %p292 = pneg %p136
        %p293 = pneg %p167
        %p294 = pneg %p164
        %s295 = sand.u32 %s154, 1
        %s296 = scalar_lea.sflag [#allocation4], %s295
        %s297 = sand.u32 %s154, 1
        %s298 = smul.addr %s297, 8
        %s299 = scalar_lea.vmem [#allocation7], %s298
        %p300 = scmp.lt.s32.totalorder %s28, 0
        %s301 = scalar_select %p300, %s28, 0
        %s302 = smul.addr %s301, 2
        %s303 = scalar_lea.vmem %s0, %s302
        %p304 = scmp.lt.s32.totalorder %s28, 0
        %s305 = scalar_select %p304, %s28, 0
        %s306 = smul.addr %s305, 2
        %s307 = scalar_lea.vmem %s1, %s306
        %s308 = smul.u32 4, %s29
        %s309 = smul.u32 4, %s29
        %s310 = smul.u32 4, %s29
        %v311 = vld [vmem:[%s303] sm:$0x3]
        %v312 = vld [vmem:[%s253] sm:$0xff]
        %314 = vset.pattern.permute.xlu0 0
        %315 = vperm.xlu0 %314, %v311
        %v316 = vpop.permute.xlu0 %315
        %v319 = vcombine.high %v312, %v312
        %v321 = vunpack.c.l.s4 1983009808
        %v322 = vunpack.c.0.s8 %v321
        %v323 = vlaneseq
        %v324 = vshrl.u32 %v323, 7
        %v325 = vsub.s32 %v322, %v324
        %v326 = vrot.slane %v312, %v325
        %v328 = vunpack.c.l.s4 1983009808
        %v329 = vunpack.c.0.s8 %v328
        %v330 = vlaneseq
        %v331 = vshrl.u32 %v330, 7
        %v332 = vsub.s32 %v329, %v331
        %v333 = vrot.slane %v319, %v332
        %v334 = vcombine.high %v326, %v326
        %v335 = vcombine.high %v333, %v333
        %v340 = vmul.f32 %v316, %v326
        %v341 = vmul.f32 %v316, %v334
        %v342 = vmul.f32 %v316, %v333
        %v343 = vmul.f32 %v316, %v335
        %v344 = vld [vmem:[%s307] sm:$0x3]
        %v345 = vld [vmem:[%s262] sm:$0xff]
        %347 = vset.pattern.permute.xlu0 0
        %348 = vperm.xlu0 %347, %v344
        %v349 = vpop.permute.xlu0 %348
        %v352 = vcombine.high %v345, %v345
        %v354 = vunpack.c.l.s4 1983009808
        %v355 = vunpack.c.0.s8 %v354
        %v356 = vlaneseq
        %v357 = vshrl.u32 %v356, 7
        %v358 = vsub.s32 %v355, %v357
        %v359 = vrot.slane %v345, %v358
        %v361 = vunpack.c.l.s4 1983009808
        %v362 = vunpack.c.0.s8 %v361
        %v363 = vlaneseq
        %v364 = vshrl.u32 %v363, 7
        %v365 = vsub.s32 %v362, %v364
        %v366 = vrot.slane %v352, %v365
        %v367 = vcombine.high %v359, %v359
        %v368 = vcombine.high %v366, %v366
        %v373 = vmul.f32 %v349, %v359
        %v374 = vmul.f32 %v349, %v367
        %v375 = vmul.f32 %v349, %v366
        %v376 = vmul.f32 %v349, %v368
        %v377 = vadd.f32 %v340, %v373
        %v378 = vadd.f32 %v341, %v374
        %v379 = vadd.f32 %v342, %v375
        %v380 = vadd.f32 %v343, %v376
        %v385 = vcombine.low %v377, %v378
        %v386 = vcombine.low %v379, %v380
        %v388 = vunpack.c.l.s4 1983009808
        %v389 = vunpack.c.0.s8 %v388
        %v390 = vlaneseq
        %v391 = vshrl.u32 %v390, 7
        %v392 = vsub.s32 %v389, %v391
        %v393 = vrot.slane %v385, %v392
        %v395 = vunpack.c.l.s4 1983009808
        %v396 = vunpack.c.0.s8 %v395
        %v397 = vlaneseq
        %v398 = vshrl.u32 %v397, 7
        %v399 = vsub.s32 %v396, %v398
        %v400 = vrot.slane %v386, %v399
        %v401 = vcombine.low %v393, %v400
        %403 = vst [vmem:[%s299] sm:$0xff] %v401
        %s404 = sand.u32 %s154, 1
        %s405 = scalar_lea.sflag [#allocation4], %s404
        %s406 = sand.u32 %s154, 1
        %s407 = smul.addr %s406, 8
        %s408 = scalar_lea.vmem [#allocation7], %s407
        // Predicated region
        $region45: #{tpu_custom_call.1} parent=35 // pred_check
          %p409 = pneg %p164
        $region46: #{tpu_custom_call.1} parent=35 // pred_check_branch
          %411 = sbr.rel (%p409) target = $region48
        $region47: #{tpu_custom_call.1} parent=35 // pred_region
          %s412 = smul.u32 4, %s29
          %s414 = ssub.s32 128, 128
          %415 = vsyncadd %s405, %s414
          %s416 = smul.addr %s28, 8
          %s417 = sadd.s32 %s412, %s416
          %s418 = smul.addr %s417, 32
          %s419 = scalar_lea.hbm %s4, %s418
          %s421 = sshll.u32 %s408, 4
          %s422 = int_to_ptr.vmem [resolvable:$true] %s421
          %424 = dma.vmem_to_hbm [thread:$0]  %s422, 128, %s419, %s405
        $region48: #{tpu_custom_call.1} parent=35 // pred_fallthru
          _
      $region36: #{tpu_custom_call.1} parent=5 // pred_fallthru
        _
      %p425 = scmp.le.s32.totalorder 2, %s19
      // Predicated region
      $region49: #{tpu_custom_call.1} parent=5 // pred_check
        %p426 = pneg %p425
      $region50: #{tpu_custom_call.1} parent=5 // pred_check_branch
        %428 = sbr.rel (%p426) target = $region52
      $region51: #{tpu_custom_call.1} parent=5 // pred_region
        %s429 = ssub.s32 %s19, 2
        // Predicated region
        $region53: #{tpu_custom_call.1} parent=51 // pred_check
          %p430 = pneg %p170
        $region54: #{tpu_custom_call.1} parent=51 // pred_check_branch
          %432 = sbr.rel (%p430) target = $region56
        $region55: #{tpu_custom_call.1} parent=51 // pred_region
          %s433 = sand.u32 %s155, 1
          %s434 = scalar_lea.sflag [#allocation4], %s433
          %s435 = sand.u32 %s155, 1
          %s436 = smul.addr %s435, 8
          %s437 = scalar_lea.vmem [#allocation7], %s436
          %438 = dma.done %s434, 128
        $region56: #{tpu_custom_call.1} parent=51 // pred_fallthru
          _
      $region52: #{tpu_custom_call.1} parent=5 // pred_fallthru
        _
    $region6: #{tpu_custom_call.1} parent=1 // loop_footer
      %s23 = sadd.s32 1, %s19
    $region7: #{tpu_custom_call.1} parent=1 // loop_footer_branch
      %18 = sbr.rel target = $region3
    $region8: #{tpu_custom_call.1} parent=1 // loop_exit
      _
    %439 = vsyncpa [#allocation3], 1
    %s440 = scalar_lea.sflag [#allocation3], 1
    %441 = vsyncpa %s440, 1
    %442 = vsyncpa [#allocation6], 1
    %s443 = scalar_lea.sflag [#allocation6], 1
    %444 = vsyncpa %s443, 1
    %445 = vsyncpa [#allocation4], 1
    %s446 = scalar_lea.sflag [#allocation4], 1
    %447 = vsyncpa %s446, 1

</llo_original>
